<compile_context>
chip_gen: v5e
topology: v5e:2x2
jax: 0.10.0
libtpu: 0.0.40
codegen_flags: <defaults>
</compile_context>

<pallas_src>
import functools

import jax
import jax.numpy as jnp
from jax.experimental import pallas as pl
from jax.experimental.pallas import tpu as pltpu

# dataset -> (coef, lin, const) for  sigma_target = sqrt(coef*(-mu^2 + lin*mu + const))
_DATASET_COEFFS = {
    "KONIQ10K": (0.09, 6.0, -5.0),
    "bid": (0.1683, 5.0, 0.0),
    "livec": (0.1841, 100.0, 0.0),
    "flive": (0.1477, 100.0, 0.0),
    "SPAQ": (0.1477, 100.0, 0.0),
}

_LANES = 128
_SUBLANES = 8
_MAX_TILE_ROWS = 8192                  # 8192*128*4B = 4 MiB per input tile
_VMEM_LIMIT_BYTES = 32 * 1024 * 1024   # fits v5e/v6e/v7x physical VMEM


def _round_up(x, m):
    return (x + m - 1) // m * m


def _var_loss_kernel(mu_ref, sp_ref, psum_ref, *, n_valid, coef, lin, coef_const):
    """One row tile: squared error vs target sigma, tail-masked by flat index,
    reduced along the leading axis to an (8, 128) partial-sum slab."""
    tile_r = mu_ref.shape[0]
    mu = mu_ref[...].astype(jnp.float32)
    sp = sp_ref[...].astype(jnp.float32)
    # FMA-friendly form of coef * (-mu^2 + lin*mu + const):
    #   coef*mu*(lin - mu) + coef*const   (coef*const folded at trace time)
    arg = coef * mu * (lin - mu) + coef_const
    sigma_target = jnp.sqrt(arg)          # EUP; NaN if arg < 0 (matches torch)
    diff = sp - sigma_target
    sq = diff * diff

    # Mask the ragged tail: global flat index of element (r, c) in this block.
    row = jax.lax.broadcasted_iota(jnp.int32, (tile_r, _LANES), 0)
    col = jax.lax.broadcasted_iota(jnp.int32, (tile_r, _LANES), 1)
    gidx = (pl.program_id(0) * tile_r + row) * _LANES + col
    sq = jnp.where(gidx < n_valid, sq, 0.0)

    # (tile_r, 128) -> (tile_r//8, 8, 128): tile-boundary-preserving reshape,
    # then reduce the leading axis with pure VPU elementwise adds.
    psum_ref[...] = jnp.sum(sq.reshape(tile_r // _SUBLANES, _SUBLANES, _LANES), axis=0)


def var_loss(mu_pred, sigma_pred, dataset="KONIQ10K",
             mu_mid=3, alpha_max=1, alpha_min=0.5, sigma_threshold=0.3):
    """Pallas implementation of var_loss.forward.

    mu_pred / sigma_pred: arrays of identical shape (any shape, f32 or bf16).
    Returns a scalar f32 loss.
    """
    if dataset not in _DATASET_COEFFS:
        raise ValueError(f"unknown dataset {dataset}")
    coef, lin, const = _DATASET_COEFFS[dataset]
    assert mu_pred.shape == sigma_pred.shape
    n = mu_pred.size
    assert n > 0

    mu_flat = jnp.ravel(mu_pred)
    sp_flat = jnp.ravel(sigma_pred)

    # Only pad to the next multiple of 128 lanes (<=127 elements) when needed;
    # pad values are irrelevant because the kernel masks by flat index.
    padded = _round_up(n, _LANES)
    if padded != n:
        mu_flat = jnp.pad(mu_flat, (0, padded - n))
        sp_flat = jnp.pad(sp_flat, (0, padded - n))
    rows = padded // _LANES
    mu2d = mu_flat.reshape(rows, _LANES)
    sp2d = sp_flat.reshape(rows, _LANES)

    # Tile sizing: large tiles to amortize per-step overhead; >=2 (even) blocks
    # when there is enough work so v7x megacore can split the parallel grid.
    rows8 = _round_up(rows, _SUBLANES)
    if rows8 <= 2 * _SUBLANES:
        tile_r = rows8
    else:
        nblk = max(2, pl.cdiv(rows8, _MAX_TILE_ROWS))
        nblk += nblk % 2
        tile_r = min(_MAX_TILE_ROWS, _round_up(pl.cdiv(rows8, nblk), _SUBLANES))
    grid_n = pl.cdiv(rows, tile_r)

    kernel = functools.partial(
        _var_loss_kernel,
        n_valid=int(n),
        coef=float(coef),
        lin=float(lin),
        coef_const=float(coef * const),
    )

    itemsize = jnp.dtype(mu_pred.dtype).itemsize
    partials = pl.pallas_call(
        kernel,
        out_shape=jax.ShapeDtypeStruct((grid_n * _SUBLANES, _LANES), jnp.float32),
        grid=(grid_n,),
        in_specs=[
            pl.BlockSpec((tile_r, _LANES), lambda i: (i, 0)),
            pl.BlockSpec((tile_r, _LANES), lambda i: (i, 0)),
        ],
        out_specs=pl.BlockSpec((_SUBLANES, _LANES), lambda i: (i, 0)),
        compiler_params=pltpu.CompilerParams(
            dimension_semantics=("parallel",),
            vmem_limit_bytes=_VMEM_LIMIT_BYTES),
        cost_estimate=pl.CostEstimate(
            flops=6 * n,
            transcendentals=n,
            bytes_accessed=2 * n * itemsize + grid_n * _SUBLANES * _LANES * 4),
    )(mu2d, sp2d)

    # Tiny final cross-lane reduction + mean normalization in XLA.
    return jnp.sum(partials) / n


def _reference(mu_pred, sigma_pred, dataset="KONIQ10K"):
    coef, lin, const = _DATASET_COEFFS[dataset]
    mu = mu_pred.astype(jnp.float32)
    sp = sigma_pred.astype(jnp.float32)
    sigma_target = jnp.sqrt(coef * (-mu ** 2 + lin * mu + const))
    return jnp.mean((sp - sigma_target) ** 2)


if __name__ == "__main__":
    key = jax.random.PRNGKey(0)
    k1, k2, k3, k4 = jax.random.split(key, 4)

    # Small shape: 8 rows x 128 lanes of per-sample scalar predictions.
    # KONIQ10K scores live in (1, 5); keep mu inside so the sqrt argument > 0.
    mu_pred = jax.random.uniform(k1, (8, 128), jnp.float32, minval=1.5, maxval=4.5)
    sigma_pred = jax.random.uniform(k2, (8, 128), jnp.float32, minval=0.0, maxval=1.0)
    loss = jax.block_until_ready(var_loss(mu_pred, sigma_pred, dataset="KONIQ10K"))
    ref = _reference(mu_pred, sigma_pred, dataset="KONIQ10K")
    assert jnp.allclose(loss, ref, rtol=1e-5, atol=1e-6), (loss, ref)

    # Ragged size (n not a multiple of 128) to exercise the in-kernel tail mask.
    mu_r = jax.random.uniform(k3, (3, 70), jnp.float32, minval=1.5, maxval=4.5)
    sg_r = jax.random.uniform(k4, (3, 70), jnp.float32, minval=0.0, maxval=1.0)
    loss_r = jax.block_until_ready(var_loss(mu_r, sg_r, dataset="bid"))
    ref_r = _reference(mu_r, sg_r, dataset="bid")
    assert jnp.allclose(loss_r, ref_r, rtol=1e-5, atol=1e-6), (loss_r, ref_r)

    print("KERNEL_OK")
</pallas_src>

<mosaic_0001>
module attributes {stable_mosaic.version = 11 : i64} {
  func.func @_var_loss_kernel(%arg0: i32, %arg1: memref<8x128xf32, #tpu.memory_space<vmem>>, %arg2: memref<8x128xf32, #tpu.memory_space<vmem>>, %arg3: memref<8x128xf32, #tpu.memory_space<vmem>>) attributes {dimension_semantics = [#tpu.dimension_semantics<parallel>], iteration_bounds = array<i64: 1>, scalar_prefetch = 0 : i64, scratch_operands = 0 : i64, tpu.core_type = #tpu.core_type<tc>, window_params = [{transform_indices = @transform_0, window_bounds = array<i64: 8, 128>}, {transform_indices = @transform_1, window_bounds = array<i64: 8, 128>}, {transform_indices = @transform_2, window_bounds = array<i64: 8, 128>}]} {
    %c0 = arith.constant 0 : index
    %c0_0 = arith.constant 0 : index
    %0 = vector.load %arg1[%c0, %c0_0] : memref<8x128xf32, #tpu.memory_space<vmem>>, vector<8x128xf32>
    %c0_1 = arith.constant 0 : index
    %c0_2 = arith.constant 0 : index
    %1 = vector.load %arg2[%c0_1, %c0_2] : memref<8x128xf32, #tpu.memory_space<vmem>>, vector<8x128xf32>
    %cst = arith.constant 9.000000e-02 : f32
    %2 = vector.broadcast %cst : f32 to vector<8x128xf32>
    %3 = arith.mulf %2, %0 : vector<8x128xf32>
    %cst_3 = arith.constant 6.000000e+00 : f32
    %4 = vector.broadcast %cst_3 : f32 to vector<8x128xf32>
    %5 = arith.subf %4, %0 : vector<8x128xf32>
    %6 = arith.mulf %3, %5 : vector<8x128xf32>
    %cst_4 = arith.constant -4.500000e-01 : f32
    %7 = vector.broadcast %cst_4 : f32 to vector<8x128xf32>
    %8 = arith.addf %6, %7 : vector<8x128xf32>
    %9 = math.sqrt %8 : vector<8x128xf32>
    %10 = arith.subf %1, %9 : vector<8x128xf32>
    %11 = arith.mulf %10, %10 : vector<8x128xf32>
    %12 = tpu.iota {dimensions = array<i32: 0>} : vector<8x128xi32>
    %13 = tpu.iota {dimensions = array<i32: 1>} : vector<8x128xi32>
    %c8_i32 = arith.constant 8 : i32
    %14 = arith.muli %arg0, %c8_i32 : i32
    %15 = vector.broadcast %14 : i32 to vector<8x128xi32>
    %16 = arith.addi %15, %12 : vector<8x128xi32>
    %c128_i32 = arith.constant 128 : i32
    %17 = vector.broadcast %c128_i32 : i32 to vector<8x128xi32>
    %18 = arith.muli %16, %17 : vector<8x128xi32>
    %19 = arith.addi %18, %13 : vector<8x128xi32>
    %c1024_i32 = arith.constant 1024 : i32
    %20 = vector.broadcast %c1024_i32 : i32 to vector<8x128xi32>
    %21 = arith.cmpi slt, %19, %20 : vector<8x128xi32>
    %cst_5 = arith.constant 0.000000e+00 : f32
    %22 = vector.broadcast %cst_5 : f32 to vector<8x128xf32>
    %23 = arith.select %21, %11, %22 : vector<8x128xi1>, vector<8x128xf32>
    %24 = vector.shape_cast %23 : vector<8x128xf32> to vector<1x8x128xf32>
    %cst_6 = arith.constant dense<0.000000e+00> : vector<8x128xf32>
    %25 = vector.multi_reduction <add>, %24, %cst_6 [0] : vector<1x8x128xf32> to vector<8x128xf32>
    %c0_7 = arith.constant 0 : index
    %c0_8 = arith.constant 0 : index
    %26 = vector.load %arg3[%c0_7, %c0_8] : memref<8x128xf32, #tpu.memory_space<vmem>>, vector<8x128xf32>
    tpu.vector_store %arg3[%c0_7, %c0_8], %25 {strides = array<i32>} : memref<8x128xf32, #tpu.memory_space<vmem>>, vector<8x128xf32>,
    return
  }
  func.func @transform_0(%arg0: i32) -> (i32, i32) {
    %c0_i32 = arith.constant 0 : i32
    %c0_i32_0 = arith.constant 0 : i32
    return %arg0, %c0_i32 : i32, i32
  }
  func.func @transform_1(%arg0: i32) -> (i32, i32) {
    %c0_i32 = arith.constant 0 : i32
    %c0_i32_0 = arith.constant 0 : i32
    return %arg0, %c0_i32 : i32, i32
  }
  func.func @transform_2(%arg0: i32) -> (i32, i32) {
    %c0_i32 = arith.constant 0 : i32
    %c0_i32_0 = arith.constant 0 : i32
    return %arg0, %c0_i32 : i32, i32
  }
}

</mosaic_0001>

<llo_original>
// kernel: tpu_custom_call.1
$region0: #{tpu_custom_call.1}
  #allocation0 [shape = 'u32[]', space=smem, size = 0x4, offset = 0x4, fixed_abs, tag = 'smem constant byte address 0x4 - core index']
  #allocation1 [shape = 'u32[72,128]{1,0:T(1,128)}', space=vmem, size = 0x9000, scoped, tag = 'internal scratch']
  %s0 = inlined_call_operand.hbm [shape: f32[8,128], index: 0, kind: input, shape index: {}]
  %s1 = inlined_call_operand.hbm [shape: f32[8,128], index: 1, kind: input, shape index: {}]
  %s2 = inlined_call_operand.hbm [shape: f32[8,128], index: 2, kind: output, shape index: {}]
  %s3 = sld [smem:[#allocation0]]
  $region26: #{tpu_custom_call.1} parent=0
    _
  %s5 = ssub.s32 1, %s3
  %s6 = scalar_select 0, %s5, %s3
  $region1: #{tpu_custom_call.1} parent=0
    #allocation2 [shape = 'u8[4096]{0}', space=vmem, size = 0x1000, scoped, tag = 'input window, operand 0, single buffered']
    #allocation3 [shape = 's32[1]{0}', space=sflag, size = 0x4, scoped, tag = 'scoped memory for tpu_custom_call.1']
    #allocation4 [shape = 's32[1]{0}', space=sflag, size = 0x4, scoped, tag = 'scoped memory for tpu_custom_call.1']
    #allocation5 [shape = 'u8[4096]{0}', space=vmem, size = 0x1000, scoped, tag = 'input window, operand 1, single buffered']
    #allocation6 [shape = 's32[1]{0}', space=sflag, size = 0x4, scoped, tag = 'scoped memory for tpu_custom_call.1']
    #allocation7 [shape = 'u8[4096]{0}', space=vmem, size = 0x1000, scoped, tag = 'output window, operand 0, single buffered']
    %7 = vsyncpa [#allocation3], 0
    %8 = vsyncpa [#allocation6], 0
    %9 = vsyncpa [#allocation4], 0
    // Predicated region
    $region2: #{tpu_custom_call.1} parent=1 // pred_check
      _
    $region3: #{tpu_custom_call.1} parent=1 // pred_check_branch
      %11 = sbr.rel (0) target = $region5
    $region4: #{tpu_custom_call.1} parent=1 // pred_region
      %13 = vsyncadd [#allocation3], 0
      %s15 = sshll.u32 %s0, 4
      %s16 = int_to_ptr.hbm [resolvable:$true] %s15
      %s17 = sshll.u32 [#allocation2], 4
      %s18 = int_to_ptr.vmem [resolvable:$true] %s17
      %20 = dma.hbm_to_vmem [thread:$0]  %s16, 128, %s18, [#allocation3]
    $region5: #{tpu_custom_call.1} parent=1 // pred_fallthru
      _
    // Predicated region
    $region6: #{tpu_custom_call.1} parent=1 // pred_check
      _
    $region7: #{tpu_custom_call.1} parent=1 // pred_check_branch
      %22 = sbr.rel (0) target = $region9
    $region8: #{tpu_custom_call.1} parent=1 // pred_region
      %24 = vsyncadd [#allocation6], 0
      %s26 = sshll.u32 %s1, 4
      %s27 = int_to_ptr.hbm [resolvable:$true] %s26
      %s28 = sshll.u32 [#allocation5], 4
      %s29 = int_to_ptr.vmem [resolvable:$true] %s28
      %31 = dma.hbm_to_vmem [thread:$0]  %s27, 128, %s29, [#allocation6]
    $region9: #{tpu_custom_call.1} parent=1 // pred_fallthru
      _
    // Predicated region
    $region10: #{tpu_custom_call.1} parent=1 // pred_check
      _
    $region11: #{tpu_custom_call.1} parent=1 // pred_check_branch
      %33 = sbr.rel (0) target = $region13
    $region12: #{tpu_custom_call.1} parent=1 // pred_region
      %35 = dma.done [#allocation3], 128
    $region13: #{tpu_custom_call.1} parent=1 // pred_fallthru
      _
    // Predicated region
    $region14: #{tpu_custom_call.1} parent=1 // pred_check
      _
    $region15: #{tpu_custom_call.1} parent=1 // pred_check_branch
      %37 = sbr.rel (0) target = $region17
    $region16: #{tpu_custom_call.1} parent=1 // pred_region
      %39 = dma.done [#allocation6], 128
    $region17: #{tpu_custom_call.1} parent=1 // pred_fallthru
      _
    %v40 = vld [vmem:[#allocation2] sm:$0xff]
    %v41 = vld [vmem:[#allocation5] sm:$0xff]
    %v42 = vmul.f32 %v40, 0.09
    %v43 = vsub.f32 6.0, %v40
    %v44 = vmul.f32 %v42, %v43
    %v45 = vadd.f32 %v44, -0.45
    %v46 = vrsqrt.pop %v45
    %v47 = vmul.f32 %v46, %v45
    %v48 = vmul.f32 %v47, %v46
    %v49 = vmul.f32 0.5, %v48
    %v50 = vsub.f32 1.5, %v49
    %v51 = vmul.f32 %v46, %v50
    %v52 = vmul.f32 %v45, %v51
    %vm53 = vcmp.eq.f32.partialorder %v45, inf
    %v54 = vsel %vm53, %v45, %v52
    %vm55 = vcmp.eq.f32.partialorder %v45, 0.0
    %v56 = vand.u32 %v45, 2147483648
    %v57 = vsel %vm55, %v56, %v54
    %v58 = vsub.f32 %v41, %v57
    %v59 = vmul.f32 %v58, %v58
    %v60 = vlaneseq
    %v61 = vshrl.u32 %v60, 7
    %v62 = vlaneseq
    %v63 = vand.u32 %v62, 127
    %s64 = smul.u32 0, 8
    %v65 = vstv %s64
    %v66 = vadd.s32 %v65, %v61
    %v67 = vmul.u32 %v66, 128
    %v68 = vadd.s32 %v67, %v63
    %vm69 = vcmp.lt.s32.totalorder %v68, 1024
    %v70 = vsel %vm69, %v59, 0.0
    %v71 = vadd.f32 %v70, 0.0
    %72 = vst [vmem:[#allocation7] sm:$0xff] %v71
    // Predicated region
    $region18: #{tpu_custom_call.1} parent=1 // pred_check
      _
    $region19: #{tpu_custom_call.1} parent=1 // pred_check_branch
      %74 = sbr.rel (0) target = $region21
    $region20: #{tpu_custom_call.1} parent=1 // pred_region
      %76 = vsyncadd [#allocation4], 0
      %s78 = sshll.u32 [#allocation7], 4
      %s79 = int_to_ptr.vmem [resolvable:$true] %s78
      %s80 = sshll.u32 %s2, 4
      %s81 = int_to_ptr.hbm [resolvable:$true] %s80
      %83 = dma.vmem_to_hbm [thread:$0]  %s79, 128, %s81, [#allocation4]
    $region21: #{tpu_custom_call.1} parent=1 // pred_fallthru
      _
    // Predicated region
    $region22: #{tpu_custom_call.1} parent=1 // pred_check
      _
    $region23: #{tpu_custom_call.1} parent=1 // pred_check_branch
      %85 = sbr.rel (0) target = $region25
    $region24: #{tpu_custom_call.1} parent=1 // pred_region
      %87 = dma.done [#allocation4], 128
    $region25: #{tpu_custom_call.1} parent=1 // pred_fallthru
      _
    %88 = vsyncpa [#allocation3], 1
    %89 = vsyncpa [#allocation6], 1
    %90 = vsyncpa [#allocation4], 1

</llo_original>
